<compile_context>
chip_gen: v6e
topology: v6e:2x2x1
jax: 0.10.0
libtpu: 0.0.40
codegen_flags: <defaults>
</compile_context>

<pallas_src>
import functools

import jax
import jax.numpy as jnp
from jax.experimental import pallas as pl
from jax.experimental.pallas import tpu as pltpu


def _round_up(x, m):
    return (x + m - 1) // m * m


# --- colour-space constants, folded at trace time (f32 VPU has no FMA) ------
_XR, _XG, _XB = 0.412453 / 0.950456, 0.35758 / 0.950456, 0.180423 / 0.950456
_YR, _YG, _YB = 0.212671, 0.71516, 0.072169
_ZR, _ZG, _ZB = 0.019334 / 1.088754, 0.119193 / 1.088754, 0.950227 / 1.088754
_EPS = 6.0 / 29.0
_EPS3 = _EPS ** 3
_F_SCALE = 1.0 / (3.0 * _EPS * _EPS)
_F_OFF = 4.0 / 29.0
_L_MUL, _L_OFF = 116.0 / 100.0, -16.0 / 100.0   # L = 1.16*fy - 0.16
_A_MUL = 500.0 / 110.0 / 2.0                    # A = 2.2727*(fx-fy) + 0.5
_B_MUL = 200.0 / 110.0 / 2.0                    # B = 0.9091*(fy-fz) + 0.5


# ------------------------------- Pallas kernel -------------------------------


def _lab_l1_block_kernel(out_ref, gt_ref, acc_ref, *, block_rows, lanes,
                         nan_scrub):
    """One grid step for one batch element's row-tile.

    out_ref / gt_ref: VMEM blocks (3, block_rows, lanes) — channel 0/1/2 =
      R/G/B, pixels lane-dense over (block_rows, lanes).  Any zero padding is
      identical in both images, so it contributes exactly 0 to the loss.
    acc_ref: (8, lanes) f32 output block (per batch element), used as a
      resident accumulator across the row-tile ("arbitrary") grid axis.
    """

    def rgb2lab(ref):
        r, g, b = ref[0], ref[1], ref[2]

        def to_linear(c):
            low = c * (1.0 / 12.92)
            base = (jnp.maximum(c, 1e-4) + 0.055) * (1.0 / 1.055)
            high = jnp.exp(2.4 * jnp.log(base))           # base > 0 always
            return jnp.where(c <= 0.04045, low, high)

        rl, gl, bl = to_linear(r), to_linear(g), to_linear(b)

        # 3x3 rgb->xyz with the white-point scale folded into the rows.
        x = _XR * rl + _XG * gl + _XB * bl
        y = _YR * rl + _YG * gl + _YB * bl
        z = _ZR * rl + _ZG * gl + _ZB * bl

        def f(t):
            low = t * _F_SCALE + _F_OFF
            high = jnp.exp(jnp.log(jnp.maximum(t, 1e-4)) * (1.0 / 3.0))
            return jnp.where(t <= _EPS3, low, high)

        fx, fy, fz = f(x), f(y), f(z)

        L = _L_MUL * fy + _L_OFF
        A = _A_MUL * (fx - fy) + 0.5
        B = _B_MUL * (fy - fz) + 0.5
        if nan_scrub:
            # torch: img[img != img] = 0 — only reachable for NaN/Inf inputs
            # (every log/pow above is clamp-guarded), so off by default.
            L = jnp.where(L != L, 0.0, L)
            A = jnp.where(A != A, 0.0, A)
            B = jnp.where(B != B, 0.0, B)
        return L, A, B

    Lo, Ao, Bo = rgb2lab(out_ref)
    Lg, Ag, Bg = rgb2lab(gt_ref)
    # Per-pixel L1 over the 3 LAB channels: shape (block_rows, lanes).
    d = jnp.abs(Lo - Lg) + jnp.abs(Ao - Ag) + jnp.abs(Bo - Bg)

    @pl.when(pl.program_id(1) == 0)
    def _():
        acc_ref[...] = jnp.zeros_like(acc_ref)

    if block_rows % 8 == 0:
        # Sublane-group reduction to (8, lanes): pure VPU adds, no XLU,
        # no scalar dependency chain per step.
        acc_ref[...] += jnp.sum(d.reshape(block_rows // 8, 8, lanes), axis=0)
    else:
        # Small-image path (single short row-block per image).
        acc_ref[0:1, :] += jnp.sum(d, axis=0, keepdims=True)


# --------------------------------- wrapper ------------------------------------


def total_loss_pallas(out_image, gt_image, *, max_tile_elems=512 * 512,
                      nan_scrub=False):
    """Mean L1 loss between rgb2lab(out_image) and rgb2lab(gt_image) (NCHW)."""
    assert out_image.shape == gt_image.shape
    n, c, h, w = out_image.shape
    assert c == 3
    hw = h * w

    # Lane width dividing the pixel count -> zero-copy reshape (common case).
    lanes = None
    for cand in (512, 256, 128):
        if hw % cand == 0:
            lanes = cand
            break
    if lanes is None:           # ragged pixel count: single zero-pad copy
        lanes = 128
    rows = -(-hw // lanes)

    max_block_rows = max(8, (max_tile_elems // lanes) // 8 * 8)
    if rows <= max_block_rows:
        block_rows = rows                       # full dim -> always legal
    else:
        block_rows = max_block_rows
        for br in range(max_block_rows, 0, -8):  # prefer exact divisor (no pad)
            if rows % br == 0:
                block_rows = br
                break
    rows_p = _round_up(rows, block_rows)
    hw_p = rows_p * lanes

    def prep(img):
        flat = img.astype(jnp.float32).reshape(n, 3, hw)       # free reshape
        if hw_p != hw:
            # Zero pad: identical in both images -> zero loss contribution.
            flat = jnp.pad(flat, ((0, 0), (0, 0), (0, hw_p - hw)))
        return flat.reshape(n, 3, rows_p, lanes)                # free reshape

    a = prep(out_image)
    b = prep(gt_image)

    grid = (n, rows_p // block_rows)
    in_blk = lambda bi, ti: (bi, 0, ti, 0)

    kernel = functools.partial(_lab_l1_block_kernel, block_rows=block_rows,
                               lanes=lanes, nan_scrub=nan_scrub)

    # Per-block VMEM: 2 images * 2 buffers * 3*block_rows*lanes*4B
    # (~12 MiB at the (3, 512, 512) default) + tiny (8, lanes) output blocks.
    partials = pl.pallas_call(
        kernel,
        out_shape=jax.ShapeDtypeStruct((n, 8, lanes), jnp.float32),
        grid=grid,
        in_specs=[
            pl.BlockSpec((pl.Squeezed(), 3, block_rows, lanes), in_blk),
            pl.BlockSpec((pl.Squeezed(), 3, block_rows, lanes), in_blk),
        ],
        out_specs=pl.BlockSpec((pl.Squeezed(), 8, lanes),
                               lambda bi, ti: (bi, 0, 0)),
        compiler_params=pltpu.CompilerParams(
            # batch axis parallel (v7x 2-TC split); row-tile axis is the
            # reduction into the resident accumulator block.
            dimension_semantics=("parallel", "arbitrary"),
            vmem_limit_bytes=32 * 1024 * 1024,
        ),
    )(a, b)

    # Final cross-lane reduce + mean scaling outside the kernel.
    return jnp.sum(partials) * (1.0 / (3.0 * n * hw))


# ----------------------------- pure-JAX reference ----------------------------


def _rgb2lab_ref(img):
    rgb_to_xyz = jnp.array([[0.412453, 0.212671, 0.019334],
                            [0.35758, 0.71516, 0.119193],
                            [0.180423, 0.072169, 0.950227]], jnp.float32).T
    fxfyfz_to_lab = jnp.array([[0.0, 500.0, 0.0],
                               [116.0, -500.0, 200.0],
                               [0.0, 0.0, -200.0]], jnp.float32).T
    le = (img <= 0.04045).astype(jnp.float32)
    gt = (img > 0.04045).astype(jnp.float32)
    lin = (img / 12.92 * le
           + jnp.exp(2.4 * jnp.log((jnp.maximum(img, 1e-4) + 0.055) / 1.055)) * gt)
    n, _, h, w = img.shape
    flat = jnp.transpose(lin, (1, 0, 2, 3)).reshape(3, -1)
    xyz = rgb_to_xyz @ flat
    xyz = xyz * jnp.array([1 / 0.950456, 1.0, 1 / 1.088754],
                          jnp.float32).reshape(3, 1)
    eps = 6.0 / 29.0
    le2 = (xyz <= eps ** 3).astype(jnp.float32)
    gt2 = (xyz > eps ** 3).astype(jnp.float32)
    f = ((xyz / (3.0 * eps ** 2) + 4.0 / 29.0) * le2
         + jnp.exp(jnp.log(jnp.maximum(xyz, 1e-4)) / 3.0) * gt2)
    lab = fxfyfz_to_lab @ f + jnp.array([-16.0, 0.0, 0.0],
                                        jnp.float32).reshape(3, 1)
    lab = lab.reshape(3, n, h, w).transpose(1, 0, 2, 3)
    L = lab[:, 0] / 100.0
    A = (lab[:, 1] / 110.0 + 1.0) / 2.0
    B = (lab[:, 2] / 110.0 + 1.0) / 2.0
    lab = jnp.stack([L, A, B], axis=1)
    return jnp.where(jnp.isnan(lab), 0.0, lab)


def total_loss_ref(out_img, gt_img):
    return jnp.mean(jnp.abs(_rgb2lab_ref(out_img) - _rgb2lab_ref(gt_img)))


# ----------------------------------- main -------------------------------------

if __name__ == "__main__":
    key = jax.random.PRNGKey(0)
    k1, k2 = jax.random.split(key)
    out_img = jax.random.uniform(k1, (2, 3, 16, 16), dtype=jnp.float32)
    gt_img = jax.random.uniform(k2, (2, 3, 16, 16), dtype=jnp.float32)

    loss_fn = jax.jit(total_loss_pallas)
    loss = jax.block_until_ready(loss_fn(out_img, gt_img))

    ref = jax.block_until_ready(jax.jit(total_loss_ref)(out_img, gt_img))

    assert loss.shape == ()
    assert bool(jnp.isfinite(loss))
    assert abs(float(loss) - float(ref)) <= 5e-4 + 5e-3 * abs(float(ref)), (
        float(loss), float(ref))
    print("KERNEL_OK")
</pallas_src>

<mosaic_0001>
module attributes {stable_mosaic.version = 11 : i64} {
  func.func @_lab_l1_block_kernel(%arg0: i32, %arg1: i32, %arg2: memref<1x3x1x256xf32, #tpu.memory_space<vmem>>, %arg3: memref<1x3x1x256xf32, #tpu.memory_space<vmem>>, %arg4: memref<1x8x256xf32, #tpu.memory_space<vmem>>) attributes {dimension_semantics = [#tpu.dimension_semantics<parallel>, #tpu.dimension_semantics<arbitrary>], iteration_bounds = array<i64: 2, 1>, scalar_prefetch = 0 : i64, scratch_operands = 0 : i64, tpu.core_type = #tpu.core_type<tc>, window_params = [{transform_indices = @transform_0, window_bounds = array<i64: 1, 3, 1, 256>}, {transform_indices = @transform_1, window_bounds = array<i64: 1, 3, 1, 256>}, {transform_indices = @transform_2, window_bounds = array<i64: 1, 8, 256>}]} {
    %c0 = arith.constant 0 : index
    %c0_0 = arith.constant 0 : index
    %c0_1 = arith.constant 0 : index
    %c0_2 = arith.constant 0 : index
    %0 = vector.load %arg2[%c0, %c0_0, %c0_1, %c0_2] : memref<1x3x1x256xf32, #tpu.memory_space<vmem>>, vector<1x1x1x256xf32>
    %1 = vector.shape_cast %0 : vector<1x1x1x256xf32> to vector<1x256xf32>
    %c0_3 = arith.constant 0 : index
    %c1 = arith.constant 1 : index
    %c0_4 = arith.constant 0 : index
    %c0_5 = arith.constant 0 : index
    %2 = vector.load %arg2[%c0_3, %c1, %c0_4, %c0_5] : memref<1x3x1x256xf32, #tpu.memory_space<vmem>>, vector<1x1x1x256xf32>
    %3 = vector.shape_cast %2 : vector<1x1x1x256xf32> to vector<1x256xf32>
    %c0_6 = arith.constant 0 : index
    %c2 = arith.constant 2 : index
    %c0_7 = arith.constant 0 : index
    %c0_8 = arith.constant 0 : index
    %4 = vector.load %arg2[%c0_6, %c2, %c0_7, %c0_8] : memref<1x3x1x256xf32, #tpu.memory_space<vmem>>, vector<1x1x1x256xf32>
    %5 = vector.shape_cast %4 : vector<1x1x1x256xf32> to vector<1x256xf32>
    %cst = arith.constant 0.0773993805 : f32
    %6 = vector.broadcast %cst : f32 to vector<1x256xf32>
    %7 = arith.mulf %1, %6 : vector<1x256xf32>
    %cst_9 = arith.constant 9.99999974E-5 : f32
    %8 = vector.broadcast %cst_9 : f32 to vector<1x256xf32>
    %9 = arith.maximumf %1, %8 : vector<1x256xf32>
    %cst_10 = arith.constant 5.500000e-02 : f32
    %10 = vector.broadcast %cst_10 : f32 to vector<1x256xf32>
    %11 = arith.addf %9, %10 : vector<1x256xf32>
    %cst_11 = arith.constant 0.947867274 : f32
    %12 = vector.broadcast %cst_11 : f32 to vector<1x256xf32>
    %13 = arith.mulf %11, %12 : vector<1x256xf32>
    %14 = math.log %13 : vector<1x256xf32>
    %cst_12 = arith.constant 2.400000e+00 : f32
    %15 = vector.broadcast %cst_12 : f32 to vector<1x256xf32>
    %16 = arith.mulf %15, %14 : vector<1x256xf32>
    %17 = math.exp %16 : vector<1x256xf32>
    %cst_13 = arith.constant 4.045000e-02 : f32
    %18 = vector.broadcast %cst_13 : f32 to vector<1x256xf32>
    %19 = arith.cmpf ole, %1, %18 : vector<1x256xf32>
    %20 = arith.select %19, %7, %17 : vector<1x256xi1>, vector<1x256xf32>
    %cst_14 = arith.constant 0.0773993805 : f32
    %21 = vector.broadcast %cst_14 : f32 to vector<1x256xf32>
    %22 = arith.mulf %3, %21 : vector<1x256xf32>
    %cst_15 = arith.constant 9.99999974E-5 : f32
    %23 = vector.broadcast %cst_15 : f32 to vector<1x256xf32>
    %24 = arith.maximumf %3, %23 : vector<1x256xf32>
    %cst_16 = arith.constant 5.500000e-02 : f32
    %25 = vector.broadcast %cst_16 : f32 to vector<1x256xf32>
    %26 = arith.addf %24, %25 : vector<1x256xf32>
    %cst_17 = arith.constant 0.947867274 : f32
    %27 = vector.broadcast %cst_17 : f32 to vector<1x256xf32>
    %28 = arith.mulf %26, %27 : vector<1x256xf32>
    %29 = math.log %28 : vector<1x256xf32>
    %cst_18 = arith.constant 2.400000e+00 : f32
    %30 = vector.broadcast %cst_18 : f32 to vector<1x256xf32>
    %31 = arith.mulf %30, %29 : vector<1x256xf32>
    %32 = math.exp %31 : vector<1x256xf32>
    %cst_19 = arith.constant 4.045000e-02 : f32
    %33 = vector.broadcast %cst_19 : f32 to vector<1x256xf32>
    %34 = arith.cmpf ole, %3, %33 : vector<1x256xf32>
    %35 = arith.select %34, %22, %32 : vector<1x256xi1>, vector<1x256xf32>
    %cst_20 = arith.constant 0.0773993805 : f32
    %36 = vector.broadcast %cst_20 : f32 to vector<1x256xf32>
    %37 = arith.mulf %5, %36 : vector<1x256xf32>
    %cst_21 = arith.constant 9.99999974E-5 : f32
    %38 = vector.broadcast %cst_21 : f32 to vector<1x256xf32>
    %39 = arith.maximumf %5, %38 : vector<1x256xf32>
    %cst_22 = arith.constant 5.500000e-02 : f32
    %40 = vector.broadcast %cst_22 : f32 to vector<1x256xf32>
    %41 = arith.addf %39, %40 : vector<1x256xf32>
    %cst_23 = arith.constant 0.947867274 : f32
    %42 = vector.broadcast %cst_23 : f32 to vector<1x256xf32>
    %43 = arith.mulf %41, %42 : vector<1x256xf32>
    %44 = math.log %43 : vector<1x256xf32>
    %cst_24 = arith.constant 2.400000e+00 : f32
    %45 = vector.broadcast %cst_24 : f32 to vector<1x256xf32>
    %46 = arith.mulf %45, %44 : vector<1x256xf32>
    %47 = math.exp %46 : vector<1x256xf32>
    %cst_25 = arith.constant 4.045000e-02 : f32
    %48 = vector.broadcast %cst_25 : f32 to vector<1x256xf32>
    %49 = arith.cmpf ole, %5, %48 : vector<1x256xf32>
    %50 = arith.select %49, %37, %47 : vector<1x256xi1>, vector<1x256xf32>
    %cst_26 = arith.constant 0.433952749 : f32
    %51 = vector.broadcast %cst_26 : f32 to vector<1x256xf32>
    %52 = arith.mulf %51, %20 : vector<1x256xf32>
    %cst_27 = arith.constant 0.376219422 : f32
    %53 = vector.broadcast %cst_27 : f32 to vector<1x256xf32>
    %54 = arith.mulf %53, %35 : vector<1x256xf32>
    %55 = arith.addf %52, %54 : vector<1x256xf32>
    %cst_28 = arith.constant 0.18982783 : f32
    %56 = vector.broadcast %cst_28 : f32 to vector<1x256xf32>
    %57 = arith.mulf %56, %50 : vector<1x256xf32>
    %58 = arith.addf %55, %57 : vector<1x256xf32>
    %cst_29 = arith.constant 2.126710e-01 : f32
    %59 = vector.broadcast %cst_29 : f32 to vector<1x256xf32>
    %60 = arith.mulf %59, %20 : vector<1x256xf32>
    %cst_30 = arith.constant 7.151600e-01 : f32
    %61 = vector.broadcast %cst_30 : f32 to vector<1x256xf32>
    %62 = arith.mulf %61, %35 : vector<1x256xf32>
    %63 = arith.addf %60, %62 : vector<1x256xf32>
    %cst_31 = arith.constant 7.216900e-02 : f32
    %64 = vector.broadcast %cst_31 : f32 to vector<1x256xf32>
    %65 = arith.mulf %64, %50 : vector<1x256xf32>
    %66 = arith.addf %63, %65 : vector<1x256xf32>
    %cst_32 = arith.constant 0.017757915 : f32
    %67 = vector.broadcast %cst_32 : f32 to vector<1x256xf32>
    %68 = arith.mulf %67, %20 : vector<1x256xf32>
    %cst_33 = arith.constant 0.109476522 : f32
    %69 = vector.broadcast %cst_33 : f32 to vector<1x256xf32>
    %70 = arith.mulf %69, %35 : vector<1x256xf32>
    %71 = arith.addf %68, %70 : vector<1x256xf32>
    %cst_34 = arith.constant 0.872765541 : f32
    %72 = vector.broadcast %cst_34 : f32 to vector<1x256xf32>
    %73 = arith.mulf %72, %50 : vector<1x256xf32>
    %74 = arith.addf %71, %73 : vector<1x256xf32>
    %cst_35 = arith.constant 7.7870369 : f32
    %75 = vector.broadcast %cst_35 : f32 to vector<1x256xf32>
    %76 = arith.mulf %58, %75 : vector<1x256xf32>
    %cst_36 = arith.constant 0.137931034 : f32
    %77 = vector.broadcast %cst_36 : f32 to vector<1x256xf32>
    %78 = arith.addf %76, %77 : vector<1x256xf32>
    %cst_37 = arith.constant 9.99999974E-5 : f32
    %79 = vector.broadcast %cst_37 : f32 to vector<1x256xf32>
    %80 = arith.maximumf %58, %79 : vector<1x256xf32>
    %81 = math.log %80 : vector<1x256xf32>
    %cst_38 = arith.constant 0.333333343 : f32
    %82 = vector.broadcast %cst_38 : f32 to vector<1x256xf32>
    %83 = arith.mulf %81, %82 : vector<1x256xf32>
    %84 = math.exp %83 : vector<1x256xf32>
    %cst_39 = arith.constant 0.00885645207 : f32
    %85 = vector.broadcast %cst_39 : f32 to vector<1x256xf32>
    %86 = arith.cmpf ole, %58, %85 : vector<1x256xf32>
    %87 = arith.select %86, %78, %84 : vector<1x256xi1>, vector<1x256xf32>
    %cst_40 = arith.constant 7.7870369 : f32
    %88 = vector.broadcast %cst_40 : f32 to vector<1x256xf32>
    %89 = arith.mulf %66, %88 : vector<1x256xf32>
    %cst_41 = arith.constant 0.137931034 : f32
    %90 = vector.broadcast %cst_41 : f32 to vector<1x256xf32>
    %91 = arith.addf %89, %90 : vector<1x256xf32>
    %cst_42 = arith.constant 9.99999974E-5 : f32
    %92 = vector.broadcast %cst_42 : f32 to vector<1x256xf32>
    %93 = arith.maximumf %66, %92 : vector<1x256xf32>
    %94 = math.log %93 : vector<1x256xf32>
    %cst_43 = arith.constant 0.333333343 : f32
    %95 = vector.broadcast %cst_43 : f32 to vector<1x256xf32>
    %96 = arith.mulf %94, %95 : vector<1x256xf32>
    %97 = math.exp %96 : vector<1x256xf32>
    %cst_44 = arith.constant 0.00885645207 : f32
    %98 = vector.broadcast %cst_44 : f32 to vector<1x256xf32>
    %99 = arith.cmpf ole, %66, %98 : vector<1x256xf32>
    %100 = arith.select %99, %91, %97 : vector<1x256xi1>, vector<1x256xf32>
    %cst_45 = arith.constant 7.7870369 : f32
    %101 = vector.broadcast %cst_45 : f32 to vector<1x256xf32>
    %102 = arith.mulf %74, %101 : vector<1x256xf32>
    %cst_46 = arith.constant 0.137931034 : f32
    %103 = vector.broadcast %cst_46 : f32 to vector<1x256xf32>
    %104 = arith.addf %102, %103 : vector<1x256xf32>
    %cst_47 = arith.constant 9.99999974E-5 : f32
    %105 = vector.broadcast %cst_47 : f32 to vector<1x256xf32>
    %106 = arith.maximumf %74, %105 : vector<1x256xf32>
    %107 = math.log %106 : vector<1x256xf32>
    %cst_48 = arith.constant 0.333333343 : f32
    %108 = vector.broadcast %cst_48 : f32 to vector<1x256xf32>
    %109 = arith.mulf %107, %108 : vector<1x256xf32>
    %110 = math.exp %109 : vector<1x256xf32>
    %cst_49 = arith.constant 0.00885645207 : f32
    %111 = vector.broadcast %cst_49 : f32 to vector<1x256xf32>
    %112 = arith.cmpf ole, %74, %111 : vector<1x256xf32>
    %113 = arith.select %112, %104, %110 : vector<1x256xi1>, vector<1x256xf32>
    %cst_50 = arith.constant 1.160000e+00 : f32
    %114 = vector.broadcast %cst_50 : f32 to vector<1x256xf32>
    %115 = arith.mulf %114, %100 : vector<1x256xf32>
    %cst_51 = arith.constant -1.600000e-01 : f32
    %116 = vector.broadcast %cst_51 : f32 to vector<1x256xf32>
    %117 = arith.addf %115, %116 : vector<1x256xf32>
    %118 = arith.subf %87, %100 : vector<1x256xf32>
    %cst_52 = arith.constant 2.27272725 : f32
    %119 = vector.broadcast %cst_52 : f32 to vector<1x256xf32>
    %120 = arith.mulf %119, %118 : vector<1x256xf32>
    %cst_53 = arith.constant 5.000000e-01 : f32
    %121 = vector.broadcast %cst_53 : f32 to vector<1x256xf32>
    %122 = arith.addf %120, %121 : vector<1x256xf32>
    %123 = arith.subf %100, %113 : vector<1x256xf32>
    %cst_54 = arith.constant 0.909090936 : f32
    %124 = vector.broadcast %cst_54 : f32 to vector<1x256xf32>
    %125 = arith.mulf %124, %123 : vector<1x256xf32>
    %cst_55 = arith.constant 5.000000e-01 : f32
    %126 = vector.broadcast %cst_55 : f32 to vector<1x256xf32>
    %127 = arith.addf %125, %126 : vector<1x256xf32>
    %c0_56 = arith.constant 0 : index
    %c0_57 = arith.constant 0 : index
    %c0_58 = arith.constant 0 : index
    %c0_59 = arith.constant 0 : index
    %128 = vector.load %arg3[%c0_56, %c0_57, %c0_58, %c0_59] : memref<1x3x1x256xf32, #tpu.memory_space<vmem>>, vector<1x1x1x256xf32>
    %129 = vector.shape_cast %128 : vector<1x1x1x256xf32> to vector<1x256xf32>
    %c0_60 = arith.constant 0 : index
    %c1_61 = arith.constant 1 : index
    %c0_62 = arith.constant 0 : index
    %c0_63 = arith.constant 0 : index
    %130 = vector.load %arg3[%c0_60, %c1_61, %c0_62, %c0_63] : memref<1x3x1x256xf32, #tpu.memory_space<vmem>>, vector<1x1x1x256xf32>
    %131 = vector.shape_cast %130 : vector<1x1x1x256xf32> to vector<1x256xf32>
    %c0_64 = arith.constant 0 : index
    %c2_65 = arith.constant 2 : index
    %c0_66 = arith.constant 0 : index
    %c0_67 = arith.constant 0 : index
    %132 = vector.load %arg3[%c0_64, %c2_65, %c0_66, %c0_67] : memref<1x3x1x256xf32, #tpu.memory_space<vmem>>, vector<1x1x1x256xf32>
    %133 = vector.shape_cast %132 : vector<1x1x1x256xf32> to vector<1x256xf32>
    %cst_68 = arith.constant 0.0773993805 : f32
    %134 = vector.broadcast %cst_68 : f32 to vector<1x256xf32>
    %135 = arith.mulf %129, %134 : vector<1x256xf32>
    %cst_69 = arith.constant 9.99999974E-5 : f32
    %136 = vector.broadcast %cst_69 : f32 to vector<1x256xf32>
    %137 = arith.maximumf %129, %136 : vector<1x256xf32>
    %cst_70 = arith.constant 5.500000e-02 : f32
    %138 = vector.broadcast %cst_70 : f32 to vector<1x256xf32>
    %139 = arith.addf %137, %138 : vector<1x256xf32>
    %cst_71 = arith.constant 0.947867274 : f32
    %140 = vector.broadcast %cst_71 : f32 to vector<1x256xf32>
    %141 = arith.mulf %139, %140 : vector<1x256xf32>
    %142 = math.log %141 : vector<1x256xf32>
    %cst_72 = arith.constant 2.400000e+00 : f32
    %143 = vector.broadcast %cst_72 : f32 to vector<1x256xf32>
    %144 = arith.mulf %143, %142 : vector<1x256xf32>
    %145 = math.exp %144 : vector<1x256xf32>
    %cst_73 = arith.constant 4.045000e-02 : f32
    %146 = vector.broadcast %cst_73 : f32 to vector<1x256xf32>
    %147 = arith.cmpf ole, %129, %146 : vector<1x256xf32>
    %148 = arith.select %147, %135, %145 : vector<1x256xi1>, vector<1x256xf32>
    %cst_74 = arith.constant 0.0773993805 : f32
    %149 = vector.broadcast %cst_74 : f32 to vector<1x256xf32>
    %150 = arith.mulf %131, %149 : vector<1x256xf32>
    %cst_75 = arith.constant 9.99999974E-5 : f32
    %151 = vector.broadcast %cst_75 : f32 to vector<1x256xf32>
    %152 = arith.maximumf %131, %151 : vector<1x256xf32>
    %cst_76 = arith.constant 5.500000e-02 : f32
    %153 = vector.broadcast %cst_76 : f32 to vector<1x256xf32>
    %154 = arith.addf %152, %153 : vector<1x256xf32>
    %cst_77 = arith.constant 0.947867274 : f32
    %155 = vector.broadcast %cst_77 : f32 to vector<1x256xf32>
    %156 = arith.mulf %154, %155 : vector<1x256xf32>
    %157 = math.log %156 : vector<1x256xf32>
    %cst_78 = arith.constant 2.400000e+00 : f32
    %158 = vector.broadcast %cst_78 : f32 to vector<1x256xf32>
    %159 = arith.mulf %158, %157 : vector<1x256xf32>
    %160 = math.exp %159 : vector<1x256xf32>
    %cst_79 = arith.constant 4.045000e-02 : f32
    %161 = vector.broadcast %cst_79 : f32 to vector<1x256xf32>
    %162 = arith.cmpf ole, %131, %161 : vector<1x256xf32>
    %163 = arith.select %162, %150, %160 : vector<1x256xi1>, vector<1x256xf32>
    %cst_80 = arith.constant 0.0773993805 : f32
    %164 = vector.broadcast %cst_80 : f32 to vector<1x256xf32>
    %165 = arith.mulf %133, %164 : vector<1x256xf32>
    %cst_81 = arith.constant 9.99999974E-5 : f32
    %166 = vector.broadcast %cst_81 : f32 to vector<1x256xf32>
    %167 = arith.maximumf %133, %166 : vector<1x256xf32>
    %cst_82 = arith.constant 5.500000e-02 : f32
    %168 = vector.broadcast %cst_82 : f32 to vector<1x256xf32>
    %169 = arith.addf %167, %168 : vector<1x256xf32>
    %cst_83 = arith.constant 0.947867274 : f32
    %170 = vector.broadcast %cst_83 : f32 to vector<1x256xf32>
    %171 = arith.mulf %169, %170 : vector<1x256xf32>
    %172 = math.log %171 : vector<1x256xf32>
    %cst_84 = arith.constant 2.400000e+00 : f32
    %173 = vector.broadcast %cst_84 : f32 to vector<1x256xf32>
    %174 = arith.mulf %173, %172 : vector<1x256xf32>
    %175 = math.exp %174 : vector<1x256xf32>
    %cst_85 = arith.constant 4.045000e-02 : f32
    %176 = vector.broadcast %cst_85 : f32 to vector<1x256xf32>
    %177 = arith.cmpf ole, %133, %176 : vector<1x256xf32>
    %178 = arith.select %177, %165, %175 : vector<1x256xi1>, vector<1x256xf32>
    %cst_86 = arith.constant 0.433952749 : f32
    %179 = vector.broadcast %cst_86 : f32 to vector<1x256xf32>
    %180 = arith.mulf %179, %148 : vector<1x256xf32>
    %cst_87 = arith.constant 0.376219422 : f32
    %181 = vector.broadcast %cst_87 : f32 to vector<1x256xf32>
    %182 = arith.mulf %181, %163 : vector<1x256xf32>
    %183 = arith.addf %180, %182 : vector<1x256xf32>
    %cst_88 = arith.constant 0.18982783 : f32
    %184 = vector.broadcast %cst_88 : f32 to vector<1x256xf32>
    %185 = arith.mulf %184, %178 : vector<1x256xf32>
    %186 = arith.addf %183, %185 : vector<1x256xf32>
    %cst_89 = arith.constant 2.126710e-01 : f32
    %187 = vector.broadcast %cst_89 : f32 to vector<1x256xf32>
    %188 = arith.mulf %187, %148 : vector<1x256xf32>
    %cst_90 = arith.constant 7.151600e-01 : f32
    %189 = vector.broadcast %cst_90 : f32 to vector<1x256xf32>
    %190 = arith.mulf %189, %163 : vector<1x256xf32>
    %191 = arith.addf %188, %190 : vector<1x256xf32>
    %cst_91 = arith.constant 7.216900e-02 : f32
    %192 = vector.broadcast %cst_91 : f32 to vector<1x256xf32>
    %193 = arith.mulf %192, %178 : vector<1x256xf32>
    %194 = arith.addf %191, %193 : vector<1x256xf32>
    %cst_92 = arith.constant 0.017757915 : f32
    %195 = vector.broadcast %cst_92 : f32 to vector<1x256xf32>
    %196 = arith.mulf %195, %148 : vector<1x256xf32>
    %cst_93 = arith.constant 0.109476522 : f32
    %197 = vector.broadcast %cst_93 : f32 to vector<1x256xf32>
    %198 = arith.mulf %197, %163 : vector<1x256xf32>
    %199 = arith.addf %196, %198 : vector<1x256xf32>
    %cst_94 = arith.constant 0.872765541 : f32
    %200 = vector.broadcast %cst_94 : f32 to vector<1x256xf32>
    %201 = arith.mulf %200, %178 : vector<1x256xf32>
    %202 = arith.addf %199, %201 : vector<1x256xf32>
    %cst_95 = arith.constant 7.7870369 : f32
    %203 = vector.broadcast %cst_95 : f32 to vector<1x256xf32>
    %204 = arith.mulf %186, %203 : vector<1x256xf32>
    %cst_96 = arith.constant 0.137931034 : f32
    %205 = vector.broadcast %cst_96 : f32 to vector<1x256xf32>
    %206 = arith.addf %204, %205 : vector<1x256xf32>
    %cst_97 = arith.constant 9.99999974E-5 : f32
    %207 = vector.broadcast %cst_97 : f32 to vector<1x256xf32>
    %208 = arith.maximumf %186, %207 : vector<1x256xf32>
    %209 = math.log %208 : vector<1x256xf32>
    %cst_98 = arith.constant 0.333333343 : f32
    %210 = vector.broadcast %cst_98 : f32 to vector<1x256xf32>
    %211 = arith.mulf %209, %210 : vector<1x256xf32>
    %212 = math.exp %211 : vector<1x256xf32>
    %cst_99 = arith.constant 0.00885645207 : f32
    %213 = vector.broadcast %cst_99 : f32 to vector<1x256xf32>
    %214 = arith.cmpf ole, %186, %213 : vector<1x256xf32>
    %215 = arith.select %214, %206, %212 : vector<1x256xi1>, vector<1x256xf32>
    %cst_100 = arith.constant 7.7870369 : f32
    %216 = vector.broadcast %cst_100 : f32 to vector<1x256xf32>
    %217 = arith.mulf %194, %216 : vector<1x256xf32>
    %cst_101 = arith.constant 0.137931034 : f32
    %218 = vector.broadcast %cst_101 : f32 to vector<1x256xf32>
    %219 = arith.addf %217, %218 : vector<1x256xf32>
    %cst_102 = arith.constant 9.99999974E-5 : f32
    %220 = vector.broadcast %cst_102 : f32 to vector<1x256xf32>
    %221 = arith.maximumf %194, %220 : vector<1x256xf32>
    %222 = math.log %221 : vector<1x256xf32>
    %cst_103 = arith.constant 0.333333343 : f32
    %223 = vector.broadcast %cst_103 : f32 to vector<1x256xf32>
    %224 = arith.mulf %222, %223 : vector<1x256xf32>
    %225 = math.exp %224 : vector<1x256xf32>
    %cst_104 = arith.constant 0.00885645207 : f32
    %226 = vector.broadcast %cst_104 : f32 to vector<1x256xf32>
    %227 = arith.cmpf ole, %194, %226 : vector<1x256xf32>
    %228 = arith.select %227, %219, %225 : vector<1x256xi1>, vector<1x256xf32>
    %cst_105 = arith.constant 7.7870369 : f32
    %229 = vector.broadcast %cst_105 : f32 to vector<1x256xf32>
    %230 = arith.mulf %202, %229 : vector<1x256xf32>
    %cst_106 = arith.constant 0.137931034 : f32
    %231 = vector.broadcast %cst_106 : f32 to vector<1x256xf32>
    %232 = arith.addf %230, %231 : vector<1x256xf32>
    %cst_107 = arith.constant 9.99999974E-5 : f32
    %233 = vector.broadcast %cst_107 : f32 to vector<1x256xf32>
    %234 = arith.maximumf %202, %233 : vector<1x256xf32>
    %235 = math.log %234 : vector<1x256xf32>
    %cst_108 = arith.constant 0.333333343 : f32
    %236 = vector.broadcast %cst_108 : f32 to vector<1x256xf32>
    %237 = arith.mulf %235, %236 : vector<1x256xf32>
    %238 = math.exp %237 : vector<1x256xf32>
    %cst_109 = arith.constant 0.00885645207 : f32
    %239 = vector.broadcast %cst_109 : f32 to vector<1x256xf32>
    %240 = arith.cmpf ole, %202, %239 : vector<1x256xf32>
    %241 = arith.select %240, %232, %238 : vector<1x256xi1>, vector<1x256xf32>
    %cst_110 = arith.constant 1.160000e+00 : f32
    %242 = vector.broadcast %cst_110 : f32 to vector<1x256xf32>
    %243 = arith.mulf %242, %228 : vector<1x256xf32>
    %cst_111 = arith.constant -1.600000e-01 : f32
    %244 = vector.broadcast %cst_111 : f32 to vector<1x256xf32>
    %245 = arith.addf %243, %244 : vector<1x256xf32>
    %246 = arith.subf %215, %228 : vector<1x256xf32>
    %cst_112 = arith.constant 2.27272725 : f32
    %247 = vector.broadcast %cst_112 : f32 to vector<1x256xf32>
    %248 = arith.mulf %247, %246 : vector<1x256xf32>
    %cst_113 = arith.constant 5.000000e-01 : f32
    %249 = vector.broadcast %cst_113 : f32 to vector<1x256xf32>
    %250 = arith.addf %248, %249 : vector<1x256xf32>
    %251 = arith.subf %228, %241 : vector<1x256xf32>
    %cst_114 = arith.constant 0.909090936 : f32
    %252 = vector.broadcast %cst_114 : f32 to vector<1x256xf32>
    %253 = arith.mulf %252, %251 : vector<1x256xf32>
    %cst_115 = arith.constant 5.000000e-01 : f32
    %254 = vector.broadcast %cst_115 : f32 to vector<1x256xf32>
    %255 = arith.addf %253, %254 : vector<1x256xf32>
    %256 = arith.subf %117, %245 : vector<1x256xf32>
    %257 = math.absf %256 : vector<1x256xf32>
    %258 = arith.subf %122, %250 : vector<1x256xf32>
    %259 = math.absf %258 : vector<1x256xf32>
    %260 = arith.addf %257, %259 : vector<1x256xf32>
    %261 = arith.subf %127, %255 : vector<1x256xf32>
    %262 = math.absf %261 : vector<1x256xf32>
    %263 = arith.addf %260, %262 : vector<1x256xf32>
    %c0_i32 = arith.constant 0 : i32
    %264 = arith.cmpi eq, %arg1, %c0_i32 : i32
    %265 = arith.extui %264 : i1 to i32
    %c0_i32_116 = arith.constant 0 : i32
    %266 = arith.cmpi ne, %265, %c0_i32_116 : i32
    scf.if %266 {
      %cst_124 = arith.constant 0.000000e+00 : f32
      %275 = vector.broadcast %cst_124 : f32 to vector<8x256xf32>
      %c0_125 = arith.constant 0 : index
      %c0_126 = arith.constant 0 : index
      %c0_127 = arith.constant 0 : index
      %276 = vector.load %arg4[%c0_125, %c0_126, %c0_127] : memref<1x8x256xf32, #tpu.memory_space<vmem>>, vector<1x8x256xf32>
      %277 = vector.shape_cast %276 : vector<1x8x256xf32> to vector<8x256xf32>
      %278 = vector.shape_cast %275 : vector<8x256xf32> to vector<1x8x256xf32>
      tpu.vector_store %arg4[%c0_125, %c0_126, %c0_127], %278 {strides = array<i32>} : memref<1x8x256xf32, #tpu.memory_space<vmem>>, vector<1x8x256xf32>,
    } else {
    }
    %c0_117 = arith.constant 0 : index
    %c0_118 = arith.constant 0 : index
    %c0_119 = arith.constant 0 : index
    %267 = vector.load %arg4[%c0_117, %c0_118, %c0_119] : memref<1x8x256xf32, #tpu.memory_space<vmem>>, vector<1x1x256xf32>
    %268 = vector.shape_cast %267 : vector<1x1x256xf32> to vector<1x256xf32>
    %cst_120 = arith.constant dense<0.000000e+00> : vector<256xf32>
    %269 = vector.multi_reduction <add>, %263, %cst_120 [0] : vector<1x256xf32> to vector<256xf32>
    %270 = vector.shape_cast %269 : vector<256xf32> to vector<1x256xf32>
    %271 = arith.addf %268, %270 : vector<1x256xf32>
    %c0_121 = arith.constant 0 : index
    %c0_122 = arith.constant 0 : index
    %c0_123 = arith.constant 0 : index
    %272 = vector.load %arg4[%c0_121, %c0_122, %c0_123] : memref<1x8x256xf32, #tpu.memory_space<vmem>>, vector<1x1x256xf32>
    %273 = vector.shape_cast %272 : vector<1x1x256xf32> to vector<1x256xf32>
    %274 = vector.shape_cast %271 : vector<1x256xf32> to vector<1x1x256xf32>
    tpu.vector_store %arg4[%c0_121, %c0_122, %c0_123], %274 {strides = array<i32>} : memref<1x8x256xf32, #tpu.memory_space<vmem>>, vector<1x1x256xf32>,
    return
  }
  func.func @transform_0(%arg0: i32, %arg1: i32) -> (i32, i32, i32, i32) {
    %c0_i32 = arith.constant 0 : i32
    %c0_i32_0 = arith.constant 0 : i32
    %c0_i32_1 = arith.constant 0 : i32
    return %arg0, %c0_i32, %arg1, %c0_i32_0 : i32, i32, i32, i32
  }
  func.func @transform_1(%arg0: i32, %arg1: i32) -> (i32, i32, i32, i32) {
    %c0_i32 = arith.constant 0 : i32
    %c0_i32_0 = arith.constant 0 : i32
    %c0_i32_1 = arith.constant 0 : i32
    return %arg0, %c0_i32, %arg1, %c0_i32_0 : i32, i32, i32, i32
  }
  func.func @transform_2(%arg0: i32, %arg1: i32) -> (i32, i32, i32) {
    %c0_i32 = arith.constant 0 : i32
    %c0_i32_0 = arith.constant 0 : i32
    %c0_i32_1 = arith.constant 0 : i32
    return %arg0, %c0_i32, %c0_i32_0 : i32, i32, i32
  }
}

</mosaic_0001>

<llo_original>
// kernel: total_loss_pallas.1
$region0: #{total_loss_pallas.1}
  #allocation0 [shape = 'u32[]', space=smem, size = 0x4, offset = 0x4, fixed_abs, tag = 'smem constant byte address 0x4 - core index']
  #allocation1 [shape = 'u32[144,128]{1,0:T(1,128)}', space=vmem, size = 0x12000, scoped, tag = 'internal scratch']
  %s0 = inlined_call_operand.vmem [shape: f32[2,3,1,256], index: 0, kind: input, shape index: {}]
  %s1 = inlined_call_operand.vmem [shape: f32[2,3,1,256], index: 1, kind: input, shape index: {}]
  %s2 = inlined_call_operand.vmem [shape: f32[2,8,256], index: 2, kind: output, shape index: {}]
  %s3 = sld [smem:[#allocation0]]
  $region45: #{total_loss_pallas.1} parent=0
    _
  %s5 = ssub.s32 1, %s3
  %s6 = scalar_select 0, %s5, %s3
  loop: start=0, step=1, limit=4
  $region2: #{total_loss_pallas.1} parent=0 // loop_pre_header
    _
  $region3: #{total_loss_pallas.1} parent=0 // loop_header
    %s8 = sphi 0, %s12
    %p9 = scmp.ge.s32.totalorder %s8, 4
    %s15 = sphi 0, %s27
    %s16 = sphi 0, %s23
    %s17 = sphi 0, %s15
    %s18 = sphi 0, %s16
    %s19 = sphi 0, %s17
    %s20 = sphi 0, %s18
    %s32 = sphi 0, %s34
    %s35 = sphi 0, %s32
    %s36 = sphi 0, %s35
    %s52 = sphi 0, %s36
    %s60 = sphi 0, %s62
    %s63 = sphi 0, %s60
    %s64 = sphi 0, %s63
    %s80 = sphi 0, %s64
    %s86 = sphi 0, %s88
    %s89 = sphi 0, %s86
    %s90 = sphi 0, %s89
    %s106 = sphi 0, %s90
  $region4: #{total_loss_pallas.1} parent=0 // loop_header_branch
    %11 = sbr.rel (%p9) target = $region8
  $region5: #{total_loss_pallas.1} parent=0 // loop_body
    %s13 = ssub.s32 %s8, 1
    %s14 = ssub.s32 %s8, 2
    %s21 = sadd.s32 1, %s16
    %p22 = scmp.ge.s32.totalorder %s21, 1
    %s23 = scalar_select %p22, 0, %s21
    %s24 = sadd.s32 1, %s15
    %s25 = scalar_select %p22, %s24, %s15
    %p26 = scmp.ge.s32.totalorder %s25, 2
    %s27 = scalar_select %p26, 0, %s25
    %s28 = ssub.s32 %s15, %s27
    %s29 = ssub.s32 %s16, %s23
    %s30 = sor.u32 %s28, %s29
    %p31 = scmp.eq.s32.totalorder %s30, 0
    %s33 = sadd.s32 %s32, 1
    %s34 = scalar_select %p31, %s32, %s33
    %p37 = pneg %p31
    %p38 = scmp.eq.s32.totalorder %s8, 1
    %p39 = por %p37, %p38
    %p40 = scmp.ne.s32.totalorder %s32, %s35
    %p41 = scmp.eq.s32.totalorder %s8, 0
    %p42 = por %p40, %p41
    %p43 = scmp.ne.s32.totalorder %s32, %s35
    %p44 = scmp.eq.s32.totalorder %s13, 1
    %p45 = por %p43, %p44
    %p46 = scmp.ne.s32.totalorder %s35, %s36
    %p47 = scmp.eq.s32.totalorder %s13, 0
    %p48 = por %p46, %p47
    %p49 = scmp.ne.s32.totalorder %s35, %s36
    %p50 = scmp.eq.s32.totalorder %s14, 1
    %p51 = por %p49, %p50
    %p53 = scmp.ne.s32.totalorder %s36, %s52
    %p54 = scmp.eq.s32.totalorder %s14, 0
    %p55 = por %p53, %p54
    %s56 = ssub.s32 %s15, %s27
    %s57 = ssub.s32 %s16, %s23
    %s58 = sor.u32 %s56, %s57
    %p59 = scmp.eq.s32.totalorder %s58, 0
    %s61 = sadd.s32 %s60, 1
    %s62 = scalar_select %p59, %s60, %s61
    %p65 = pneg %p59
    %p66 = scmp.eq.s32.totalorder %s8, 1
    %p67 = por %p65, %p66
    %p68 = scmp.ne.s32.totalorder %s60, %s63
    %p69 = scmp.eq.s32.totalorder %s8, 0
    %p70 = por %p68, %p69
    %p71 = scmp.ne.s32.totalorder %s60, %s63
    %p72 = scmp.eq.s32.totalorder %s13, 1
    %p73 = por %p71, %p72
    %p74 = scmp.ne.s32.totalorder %s63, %s64
    %p75 = scmp.eq.s32.totalorder %s13, 0
    %p76 = por %p74, %p75
    %p77 = scmp.ne.s32.totalorder %s63, %s64
    %p78 = scmp.eq.s32.totalorder %s14, 1
    %p79 = por %p77, %p78
    %p81 = scmp.ne.s32.totalorder %s64, %s80
    %p82 = scmp.eq.s32.totalorder %s14, 0
    %p83 = por %p81, %p82
    %s84 = ssub.s32 %s15, %s27
    %p85 = scmp.eq.s32.totalorder %s84, 0
    %s87 = sadd.s32 %s86, 1
    %s88 = scalar_select %p85, %s86, %s87
    %p91 = pneg %p85
    %p92 = scmp.eq.s32.totalorder %s8, 1
    %p93 = por %p91, %p92
    %p94 = scmp.ne.s32.totalorder %s86, %s89
    %p95 = scmp.eq.s32.totalorder %s8, 0
    %p96 = por %p94, %p95
    %p97 = scmp.ne.s32.totalorder %s86, %s89
    %p98 = scmp.eq.s32.totalorder %s13, 1
    %p99 = por %p97, %p98
    %p100 = scmp.ne.s32.totalorder %s89, %s90
    %p101 = scmp.eq.s32.totalorder %s13, 0
    %p102 = por %p100, %p101
    %p103 = scmp.ne.s32.totalorder %s89, %s90
    %p104 = scmp.eq.s32.totalorder %s14, 1
    %p105 = por %p103, %p104
    %p107 = scmp.ne.s32.totalorder %s90, %s106
    %p108 = scmp.eq.s32.totalorder %s14, 0
    %p109 = por %p107, %p108
    %p110 = scmp.le.s32.totalorder 1, %s8
    %p111 = scmp.lt.s32.totalorder %s8, 3
    %p112 = pnand %p110, %p111
    %p113 = pneg %p112
    // Predicated region
    $region9: #{total_loss_pallas.1} parent=5 // pred_check
      _
    $region10: #{total_loss_pallas.1} parent=5 // pred_check_branch
      %115 = sbr.rel (%p112) target = $region12
    $region11: #{total_loss_pallas.1} parent=5 // pred_region
      %s116 = ssub.s32 %s8, 1
    $region12: #{total_loss_pallas.1} parent=5 // pred_fallthru
      _
    %p117 = scmp.lt.s32.totalorder %s8, 2
    // Predicated region
    $region13: #{total_loss_pallas.1} parent=5 // pred_check
      %p118 = pneg %p117
    $region14: #{total_loss_pallas.1} parent=5 // pred_check_branch
      %120 = sbr.rel (%p118) target = $region16
    $region15: #{total_loss_pallas.1} parent=5 // pred_region
      // Predicated region
      $region17: #{total_loss_pallas.1} parent=15 // pred_check
        %p121 = pneg %p42
      $region18: #{total_loss_pallas.1} parent=15 // pred_check_branch
        %123 = sbr.rel (%p121) target = $region20
      $region19: #{total_loss_pallas.1} parent=15 // pred_region
        %p124 = scmp.lt.s32.totalorder %s15, 1
        %s125 = scalar_select %p124, %s15, 1
        %p126 = scmp.lt.s32.totalorder %s16, 0
        %s127 = scalar_select %p126, %s16, 0
        %s128 = smul.addr %s127, 2
        %s129 = smul.addr %s125, 6
        %s130 = sadd.s32 %s128, %s129
        %s131 = scalar_lea.vmem %s0, %s130
      $region20: #{total_loss_pallas.1} parent=15 // pred_fallthru
        _
      // Predicated region
      $region21: #{total_loss_pallas.1} parent=15 // pred_check
        %p132 = pneg %p70
      $region22: #{total_loss_pallas.1} parent=15 // pred_check_branch
        %134 = sbr.rel (%p132) target = $region24
      $region23: #{total_loss_pallas.1} parent=15 // pred_region
        %p135 = scmp.lt.s32.totalorder %s15, 1
        %s136 = scalar_select %p135, %s15, 1
        %p137 = scmp.lt.s32.totalorder %s16, 0
        %s138 = scalar_select %p137, %s16, 0
        %s139 = smul.addr %s138, 2
        %s140 = smul.addr %s136, 6
        %s141 = sadd.s32 %s139, %s140
        %s142 = scalar_lea.vmem %s1, %s141
      $region24: #{total_loss_pallas.1} parent=15 // pred_fallthru
        _
    $region16: #{total_loss_pallas.1} parent=5 // pred_fallthru
      _
    %p143 = scmp.le.s32.totalorder 1, %s8
    %p144 = scmp.lt.s32.totalorder %s8, 3
    %p145 = pnand %p143, %p144
    %p146 = pneg %p145
    // Predicated region
    $region25: #{total_loss_pallas.1} parent=5 // pred_check
      _
    $region26: #{total_loss_pallas.1} parent=5 // pred_check_branch
      %148 = sbr.rel (%p145) target = $region28
    $region27: #{total_loss_pallas.1} parent=5 // pred_region
      %s149 = ssub.s32 %s8, 1
      %p150 = scmp.lt.s32.totalorder %s17, 1
      %s151 = scalar_select %p150, %s17, 1
      %p152 = scmp.lt.s32.totalorder %s18, 0
      %s153 = scalar_select %p152, %s18, 0
      %s154 = smul.addr %s153, 2
      %s155 = smul.addr %s151, 6
      %s156 = sadd.s32 %s154, %s155
      %s157 = scalar_lea.vmem %s0, %s156
      %p158 = pneg %p48
      %p159 = pneg %p45
      %p160 = scmp.lt.s32.totalorder %s17, 1
      %s161 = scalar_select %p160, %s17, 1
      %p162 = scmp.lt.s32.totalorder %s18, 0
      %s163 = scalar_select %p162, %s18, 0
      %s164 = smul.addr %s163, 2
      %s165 = smul.addr %s161, 6
      %s166 = sadd.s32 %s164, %s165
      %s167 = scalar_lea.vmem %s1, %s166
      %p168 = pneg %p76
      %p169 = pneg %p73
      %p170 = pneg %p102
      %p171 = pneg %p99
      %p172 = scmp.lt.s32.totalorder %s17, 1
      %s173 = scalar_select %p172, %s17, 1
      %s174 = smul.addr %s173, 2
      %s175 = smul.addr %s174, 8
      %s176 = scalar_lea.vmem %s2, %s175
      %p177 = scmp.lt.s32.totalorder %s17, 1
      %s178 = scalar_select %p177, %s17, 1
      %p179 = scmp.lt.s32.totalorder %s18, 0
      %s180 = scalar_select %p179, %s18, 0
      %s181 = smul.addr %s180, 2
      %s182 = smul.addr %s178, 6
      %s183 = sadd.s32 %s181, %s182
      %s184 = scalar_lea.vmem %s0, %s183
      %p185 = scmp.lt.s32.totalorder %s17, 1
      %s186 = scalar_select %p185, %s17, 1
      %p187 = scmp.lt.s32.totalorder %s18, 0
      %s188 = scalar_select %p187, %s18, 0
      %s189 = smul.addr %s188, 2
      %s190 = smul.addr %s186, 6
      %s191 = sadd.s32 %s189, %s190
      %s192 = scalar_lea.vmem %s1, %s191
      %p193 = scmp.lt.s32.totalorder %s17, 1
      %s194 = scalar_select %p193, %s17, 1
      %s195 = smul.addr %s194, 2
      %s196 = smul.addr %s195, 8
      %s197 = scalar_lea.vmem %s2, %s196
      %v198 = vld [vmem:[%s184] sm:$0x3]
      %s199 = scalar_lea.vmem %s184, 2
      %v200 = vld [vmem:[%s199] sm:$0x3]
      %s201 = scalar_lea.vmem %s184, 4
      %v202 = vld [vmem:[%s201] sm:$0x3]
      %v203 = vmul.f32 %v198, 0.07739938
      %v204 = vmax.f32 %v198, 0.0001
      %v205 = vadd.f32 %v204, 0.055
      %v206 = vmul.f32 %v205, 0.9478673
      %v207 = vlog2.pop %v206
      %v208 = vmul.f32 %v207, 0.6931472
      %v209 = vmul.f32 %v208, 2.4
      %v210 = vmul.f32 %v209, 1.442695
      %v211 = vpow.pop %v210
      %vm212 = vcmp.le.f32.partialorder %v198, 0.04045
      %v213 = vsel %vm212, %v203, %v211
      %v214 = vmul.f32 %v200, 0.07739938
      %v215 = vmax.f32 %v200, 0.0001
      %v216 = vadd.f32 %v215, 0.055
      %v217 = vmul.f32 %v216, 0.9478673
      %v218 = vlog2.pop %v217
      %v219 = vmul.f32 %v218, 0.6931472
      %v220 = vmul.f32 %v219, 2.4
      %v221 = vmul.f32 %v220, 1.442695
      %v222 = vpow.pop %v221
      %vm223 = vcmp.le.f32.partialorder %v200, 0.04045
      %v224 = vsel %vm223, %v214, %v222
      %v225 = vmul.f32 %v202, 0.07739938
      %v226 = vmax.f32 %v202, 0.0001
      %v227 = vadd.f32 %v226, 0.055
      %v228 = vmul.f32 %v227, 0.9478673
      %v229 = vlog2.pop %v228
      %v230 = vmul.f32 %v229, 0.6931472
      %v231 = vmul.f32 %v230, 2.4
      %v232 = vmul.f32 %v231, 1.442695
      %v233 = vpow.pop %v232
      %vm234 = vcmp.le.f32.partialorder %v202, 0.04045
      %v235 = vsel %vm234, %v225, %v233
      %v236 = vmul.f32 %v213, 0.43395275
      %v237 = vmul.f32 %v224, 0.37621942
      %v238 = vadd.f32 %v236, %v237
      %v239 = vmul.f32 %v235, 0.18982783
      %v240 = vadd.f32 %v238, %v239
      %v241 = vmul.f32 %v213, 0.212671
      %v242 = vmul.f32 %v224, 0.71516
      %v243 = vadd.f32 %v241, %v242
      %v244 = vmul.f32 %v235, 0.072169
      %v245 = vadd.f32 %v243, %v244
      %v246 = vmul.f32 %v213, 0.017757915
      %v247 = vmul.f32 %v224, 0.10947652
      %v248 = vadd.f32 %v246, %v247
      %v249 = vmul.f32 %v235, 0.87276554
      %v250 = vadd.f32 %v248, %v249
      %v251 = vmul.f32 %v240, 7.787037
      %v252 = vadd.f32 %v251, 0.13793103
      %v253 = vmax.f32 %v240, 0.0001
      %v254 = vlog2.pop %v253
      %v255 = vmul.f32 %v254, 0.6931472
      %v256 = vmul.f32 %v255, 0.33333334
      %v257 = vmul.f32 %v256, 1.442695
      %v258 = vpow.pop %v257
      %vm259 = vcmp.le.f32.partialorder %v240, 0.008856452
      %v260 = vsel %vm259, %v252, %v258
      %v261 = vmul.f32 %v245, 7.787037
      %v262 = vadd.f32 %v261, 0.13793103
      %v263 = vmax.f32 %v245, 0.0001
      %v264 = vlog2.pop %v263
      %v265 = vmul.f32 %v264, 0.6931472
      %v266 = vmul.f32 %v265, 0.33333334
      %v267 = vmul.f32 %v266, 1.442695
      %v268 = vpow.pop %v267
      %vm269 = vcmp.le.f32.partialorder %v245, 0.008856452
      %v270 = vsel %vm269, %v262, %v268
      %v271 = vmul.f32 %v250, 7.787037
      %v272 = vadd.f32 %v271, 0.13793103
      %v273 = vmax.f32 %v250, 0.0001
      %v274 = vlog2.pop %v273
      %v275 = vmul.f32 %v274, 0.6931472
      %v276 = vmul.f32 %v275, 0.33333334
      %v277 = vmul.f32 %v276, 1.442695
      %v278 = vpow.pop %v277
      %vm279 = vcmp.le.f32.partialorder %v250, 0.008856452
      %v280 = vsel %vm279, %v272, %v278
      %v281 = vmul.f32 %v270, 1.16
      %v282 = vadd.f32 %v281, -0.16
      %v283 = vsub.f32 %v260, %v270
      %v284 = vmul.f32 %v283, 2.2727273
      %v285 = vadd.f32 %v284, 0.5
      %v286 = vsub.f32 %v270, %v280
      %v287 = vmul.f32 %v286, 0.90909094
      %v288 = vadd.f32 %v287, 0.5
      %v289 = vld [vmem:[%s192] sm:$0x3]
      %s290 = scalar_lea.vmem %s192, 2
      %v291 = vld [vmem:[%s290] sm:$0x3]
      %s292 = scalar_lea.vmem %s192, 4
      %v293 = vld [vmem:[%s292] sm:$0x3]
      %v294 = vmul.f32 %v289, 0.07739938
      %v295 = vmax.f32 %v289, 0.0001
      %v296 = vadd.f32 %v295, 0.055
      %v297 = vmul.f32 %v296, 0.9478673
      %v298 = vlog2.pop %v297
      %v299 = vmul.f32 %v298, 0.6931472
      %v300 = vmul.f32 %v299, 2.4
      %v301 = vmul.f32 %v300, 1.442695
      %v302 = vpow.pop %v301
      %vm303 = vcmp.le.f32.partialorder %v289, 0.04045
      %v304 = vsel %vm303, %v294, %v302
      %v305 = vmul.f32 %v291, 0.07739938
      %v306 = vmax.f32 %v291, 0.0001
      %v307 = vadd.f32 %v306, 0.055
      %v308 = vmul.f32 %v307, 0.9478673
      %v309 = vlog2.pop %v308
      %v310 = vmul.f32 %v309, 0.6931472
      %v311 = vmul.f32 %v310, 2.4
      %v312 = vmul.f32 %v311, 1.442695
      %v313 = vpow.pop %v312
      %vm314 = vcmp.le.f32.partialorder %v291, 0.04045
      %v315 = vsel %vm314, %v305, %v313
      %v316 = vmul.f32 %v293, 0.07739938
      %v317 = vmax.f32 %v293, 0.0001
      %v318 = vadd.f32 %v317, 0.055
      %v319 = vmul.f32 %v318, 0.9478673
      %v320 = vlog2.pop %v319
      %v321 = vmul.f32 %v320, 0.6931472
      %v322 = vmul.f32 %v321, 2.4
      %v323 = vmul.f32 %v322, 1.442695
      %v324 = vpow.pop %v323
      %vm325 = vcmp.le.f32.partialorder %v293, 0.04045
      %v326 = vsel %vm325, %v316, %v324
      %v327 = vmul.f32 %v304, 0.43395275
      %v328 = vmul.f32 %v315, 0.37621942
      %v329 = vadd.f32 %v327, %v328
      %v330 = vmul.f32 %v326, 0.18982783
      %v331 = vadd.f32 %v329, %v330
      %v332 = vmul.f32 %v304, 0.212671
      %v333 = vmul.f32 %v315, 0.71516
      %v334 = vadd.f32 %v332, %v333
      %v335 = vmul.f32 %v326, 0.072169
      %v336 = vadd.f32 %v334, %v335
      %v337 = vmul.f32 %v304, 0.017757915
      %v338 = vmul.f32 %v315, 0.10947652
      %v339 = vadd.f32 %v337, %v338
      %v340 = vmul.f32 %v326, 0.87276554
      %v341 = vadd.f32 %v339, %v340
      %v342 = vmul.f32 %v331, 7.787037
      %v343 = vadd.f32 %v342, 0.13793103
      %v344 = vmax.f32 %v331, 0.0001
      %v345 = vlog2.pop %v344
      %v346 = vmul.f32 %v345, 0.6931472
      %v347 = vmul.f32 %v346, 0.33333334
      %v348 = vmul.f32 %v347, 1.442695
      %v349 = vpow.pop %v348
      %vm350 = vcmp.le.f32.partialorder %v331, 0.008856452
      %v351 = vsel %vm350, %v343, %v349
      %v352 = vmul.f32 %v336, 7.787037
      %v353 = vadd.f32 %v352, 0.13793103
      %v354 = vmax.f32 %v336, 0.0001
      %v355 = vlog2.pop %v354
      %v356 = vmul.f32 %v355, 0.6931472
      %v357 = vmul.f32 %v356, 0.33333334
      %v358 = vmul.f32 %v357, 1.442695
      %v359 = vpow.pop %v358
      %vm360 = vcmp.le.f32.partialorder %v336, 0.008856452
      %v361 = vsel %vm360, %v353, %v359
      %v362 = vmul.f32 %v341, 7.787037
      %v363 = vadd.f32 %v362, 0.13793103
      %v364 = vmax.f32 %v341, 0.0001
      %v365 = vlog2.pop %v364
      %v366 = vmul.f32 %v365, 0.6931472
      %v367 = vmul.f32 %v366, 0.33333334
      %v368 = vmul.f32 %v367, 1.442695
      %v369 = vpow.pop %v368
      %vm370 = vcmp.le.f32.partialorder %v341, 0.008856452
      %v371 = vsel %vm370, %v363, %v369
      %v372 = vmul.f32 %v361, 1.16
      %v373 = vadd.f32 %v372, -0.16
      %v374 = vsub.f32 %v351, %v361
      %v375 = vmul.f32 %v374, 2.2727273
      %v376 = vadd.f32 %v375, 0.5
      %v377 = vsub.f32 %v361, %v371
      %v378 = vmul.f32 %v377, 0.90909094
      %v379 = vadd.f32 %v378, 0.5
      %v380 = vsub.f32 %v282, %v373
      %v381 = vand.u32 2147483647, %v380
      %v382 = vsub.f32 %v285, %v376
      %v383 = vand.u32 2147483647, %v382
      %v384 = vadd.f32 %v381, %v383
      %v385 = vsub.f32 %v288, %v379
      %v386 = vand.u32 2147483647, %v385
      %v387 = vadd.f32 %v384, %v386
      %p388 = scmp.eq.s32.totalorder %s18, 0
      // Predicated region
      $region29: #{total_loss_pallas.1} parent=27 // pred_check
        %p389 = pneg %p388
      $region30: #{total_loss_pallas.1} parent=27 // pred_check_branch
        %391 = sbr.rel (%p389) target = $region32
      $region31: #{total_loss_pallas.1} parent=27 // pred_region
        %392 = vst [vmem:[%s197] sm:$0xff] 0.0
        %393 = vst [vmem:[%s197 + $0x8] sm:$0xff] 0.0
      $region32: #{total_loss_pallas.1} parent=27 // pred_fallthru
        _
      %v394 = vld [vmem:[%s197] ss:$8 sm:$0x3]
      %v395 = vadd.f32 %v387, 0.0
      %v396 = vadd.f32 %v394, %v395
      %v397 = vlaneseq
      %vm398 = vcmp.ge.s32.totalorder %v397, 0
      %vm399 = vcmp.lt.s32.totalorder %v397, 256
      %vm400 = vmand %vm398, %vm399
      %401 = vst.msk [vmem:[%s197] ss:$8 sm:$0x3] %vm400, %v396
      %402 = vst.msk [vmem:[%s197] ss:$8 sm:$0x0] %vm400, %v396
      %p403 = scmp.lt.s32.totalorder %s17, 1
      %s404 = scalar_select %p403, %s17, 1
      %s405 = smul.addr %s404, 2
      %s406 = smul.addr %s405, 8
      %s407 = scalar_lea.vmem %s2, %s406
      // Predicated region
      $region33: #{total_loss_pallas.1} parent=27 // pred_check
        %p408 = pneg %p99
      $region34: #{total_loss_pallas.1} parent=27 // pred_check_branch
        %410 = sbr.rel (%p408) target = $region36
      $region35: #{total_loss_pallas.1} parent=27 // pred_region
        _
      $region36: #{total_loss_pallas.1} parent=27 // pred_fallthru
        _
    $region28: #{total_loss_pallas.1} parent=5 // pred_fallthru
      _
    %p411 = scmp.le.s32.totalorder 2, %s8
    // Predicated region
    $region37: #{total_loss_pallas.1} parent=5 // pred_check
      %p412 = pneg %p411
    $region38: #{total_loss_pallas.1} parent=5 // pred_check_branch
      %414 = sbr.rel (%p412) target = $region40
    $region39: #{total_loss_pallas.1} parent=5 // pred_region
      %s415 = ssub.s32 %s8, 2
      // Predicated region
      $region41: #{total_loss_pallas.1} parent=39 // pred_check
        %p416 = pneg %p105
      $region42: #{total_loss_pallas.1} parent=39 // pred_check_branch
        %418 = sbr.rel (%p416) target = $region44
      $region43: #{total_loss_pallas.1} parent=39 // pred_region
        %p419 = scmp.lt.s32.totalorder %s19, 1
        %s420 = scalar_select %p419, %s19, 1
        %s421 = smul.addr %s420, 2
        %s422 = smul.addr %s421, 8
        %s423 = scalar_lea.vmem %s2, %s422
      $region44: #{total_loss_pallas.1} parent=39 // pred_fallthru
        _
    $region40: #{total_loss_pallas.1} parent=5 // pred_fallthru
      _
  $region6: #{total_loss_pallas.1} parent=0 // loop_footer
    %s12 = sadd.s32 1, %s8
  $region7: #{total_loss_pallas.1} parent=0 // loop_footer_branch
    %7 = sbr.rel target = $region3
  $region8: #{total_loss_pallas.1} parent=0 // loop_exit
    _

</llo_original>
